<compile_context>
chip_gen: v5e
topology: v5e:2x2
jax: 0.10.0
libtpu: 0.0.40
codegen_flags: <defaults>
</compile_context>

<pallas_src>
import functools

import jax
import jax.numpy as jnp
from jax.experimental import pallas as pl
from jax.experimental.pallas import tpu as pltpu


def _input_transition_kernel(x_ref, w_ref, p_ref, g_ref, out_ref, *,
                             taps, shifts, H, W, cpad, cnt_inv, eps, elu):
    """One batch sample per grid step.

    Layouts (channels on sublanes, flattened H*W on lanes):
      x_ref:   (1, C_in, HW)        input sample
      w_ref:   (2*C_out, 9*cpad)    block weight: rows [0:C_out] = 9 conv1 taps
                                    (cpad cols/tap, zero padded), rows
                                    [C_out:2C_out] = conv2 on centre-tap cols
      p_ref:   (C_out, 8) f32       [b1, b2, gamma, beta, prelu_slope, 0, 0, 0]
      g_ref:   (C_out, C_out) f32   1.0 where two channels share a GN group
      out_ref: (1, C_out, HW)
    """
    x = x_ref[0]                                   # (C_in, HW), native dtype
    c_in = x.shape[0]
    c_out = out_ref.shape[1]
    hw = out_ref.shape[2]

    # Pad channels to an 8-sublane slab so the 9-slab stack stays aligned.
    if cpad != c_in:
        x = jnp.concatenate([x, jnp.zeros((cpad - c_in, hw), x.dtype)], axis=0)

    # In-kernel tap validity masks from iota (no HBM mask traffic).
    lane = jax.lax.broadcasted_iota(jnp.int32, (1, hw), 1)
    if (W & (W - 1)) == 0:                         # power-of-two W: bit ops
        rr = jax.lax.shift_right_logical(lane, W.bit_length() - 1)
        cc = jax.lax.bitwise_and(lane, W - 1)
    else:
        rr = lane // W
        cc = lane - rr * W

    # conv1 (3x3, pad=1) + conv2 (1x1) as ONE matmul over stacked rolled taps.
    slabs = []
    for t, (dy, dx) in enumerate(taps):
        s = x if shifts[t] == 0 else pltpu.roll(x, shifts[t], axis=1)
        if (dy, dx) != (0, 0):                     # centre tap: mask all-ones
            valid = ((rr + dy >= 0) & (rr + dy < H) &
                     (cc + dx >= 0) & (cc + dx < W))
            s = jnp.where(valid, s, jnp.zeros((), s.dtype))
        slabs.append(s)
    stacked = jnp.concatenate(slabs, axis=0)                      # (9*cpad, HW)
    big = jnp.dot(w_ref[...], stacked,
                  preferred_element_type=jnp.float32)             # (2*C_out, HW)
    acc1 = big[:c_out]                             # conv1 output, no bias
    x16 = big[c_out:]                              # conv2 output, no bias

    # GroupNorm stats: lane-reduce first (XLU), tiny group-sum matmuls after.
    p = p_ref[...]
    b1, b2 = p[:, 0:1], p[:, 1:2]
    gamma, beta = p[:, 2:3], p[:, 3:4]
    hw_f = float(hw)
    s1 = jnp.sum(acc1, axis=1, keepdims=True)                     # (C_out, 1)
    s2 = jnp.sum(acc1 * acc1, axis=1, keepdims=True)              # (C_out, 1)
    s1b = s1 + hw_f * b1                                          # adjust for +b1
    s2b = s2 + 2.0 * b1 * s1 + hw_f * (b1 * b1)
    gs1 = jnp.dot(g_ref[...], s1b, preferred_element_type=jnp.float32)
    gs2 = jnp.dot(g_ref[...], s2b, preferred_element_type=jnp.float32)
    mean = gs1 * cnt_inv
    var = gs2 * cnt_inv - mean * mean
    inv = jax.lax.rsqrt(jnp.maximum(var, 0.0) + eps)              # EUP

    # Fold conv1 bias + GN affine + conv2 bias into one per-channel scale/shift.
    scale = gamma * inv
    shift = beta + scale * (b1 - mean) + b2
    v = acc1 * scale + x16 + shift

    if elu:
        act = jnp.where(v > 0.0, v, jnp.exp(jnp.minimum(v, 0.0)) - 1.0)
    else:
        act = jnp.where(v > 0.0, v, p[:, 4:5] * v)
    out_ref[0] = act.astype(out_ref.dtype)


def input_transition_2d(x_nchw, conv1_w, conv1_b, conv2_w, conv2_b,
                        gn_weight, gn_bias, *, num_groups=8, eps=1e-5,
                        elu=True, prelu_weight=None):
    """Apply InputTransition2d (VNet2d) to an NCHW input."""
    N, C_in, H, W = x_nchw.shape
    C_out = conv1_w.shape[0]
    assert conv1_w.shape == (C_out, C_in, 3, 3)
    assert conv2_w.shape == (C_out, C_in, 1, 1)
    assert C_out % num_groups == 0
    HW = H * W
    cs = C_out // num_groups
    dtype = x_nchw.dtype
    cpad = ((C_in + 7) // 8) * 8                   # sublane-aligned slab width

    # NCHW -> (N, C_in, H*W): pure reshape (no HBM transpose, no padding pass).
    x_flat = x_nchw.reshape(N, C_in, HW)

    # Tap order and matching static lane shifts on the flattened HW axis.
    taps = tuple((dy, dx) for dy in (-1, 0, 1) for dx in (-1, 0, 1))
    shifts = tuple((-(dy * W + dx)) % HW for dy, dx in taps)

    # Block weight combining conv1 (top C_out rows, 9 tap column-blocks) and
    # conv2 (bottom C_out rows, centre-tap columns) -> one MXU contraction.
    wblk = jnp.zeros((2 * C_out, 9 * cpad), jnp.float32)
    for t, (dy, dx) in enumerate(taps):
        wblk = wblk.at[:C_out, t * cpad:t * cpad + C_in].set(
            conv1_w[:, :, dy + 1, dx + 1].astype(jnp.float32))
    ct = taps.index((0, 0))
    wblk = wblk.at[C_out:, ct * cpad:ct * cpad + C_in].set(
        conv2_w[:, :, 0, 0].astype(jnp.float32))
    wblk = wblk.astype(dtype)

    # Per-channel parameters packed into one small f32 array (single tiny DMA).
    if prelu_weight is None:
        slope = jnp.full((C_out,), 0.25, jnp.float32)   # PyTorch PReLU default
    else:
        slope = jnp.broadcast_to(
            jnp.asarray(prelu_weight, jnp.float32).reshape(-1), (C_out,))
    zeros_c = jnp.zeros((C_out,), jnp.float32)
    params = jnp.stack([conv1_b.astype(jnp.float32),
                        conv2_b.astype(jnp.float32),
                        gn_weight.astype(jnp.float32),
                        gn_bias.astype(jnp.float32),
                        slope, zeros_c, zeros_c, zeros_c], axis=1)  # (C_out, 8)

    gid = jnp.arange(C_out) // cs
    gmap = (gid[:, None] == gid[None, :]).astype(jnp.float32)       # (C_out, C_out)

    kernel = functools.partial(
        _input_transition_kernel,
        taps=taps, shifts=shifts, H=H, W=W, cpad=cpad,
        cnt_inv=1.0 / float(cs * HW), eps=float(eps), elu=bool(elu))

    # Explicit VMEM budget: double-buffered I/O blocks + in-kernel temps with
    # margin, clamped to stay within v7x physical VMEM (64 MiB).
    itm = jnp.dtype(dtype).itemsize
    est = (2 * C_in * HW * itm + 2 * C_out * HW * itm
           + 2 * wblk.size * itm + (9 * cpad * itm + 8 * C_out * 4) * HW)
    vmem_limit = int(min(max(2 * est, 16 * 2 ** 20), 64 * 2 ** 20))

    out_flat = pl.pallas_call(
        kernel,
        out_shape=jax.ShapeDtypeStruct((N, C_out, HW), dtype),
        grid_spec=pltpu.PrefetchScalarGridSpec(
            num_scalar_prefetch=0,
            grid=(N,),
            in_specs=[
                pl.BlockSpec((1, C_in, HW), lambda n: (n, 0, 0)),       # x
                pl.BlockSpec((2 * C_out, 9 * cpad), lambda n: (0, 0)),  # weights
                pl.BlockSpec((C_out, 8), lambda n: (0, 0)),             # params
                pl.BlockSpec((C_out, C_out), lambda n: (0, 0)),         # group map
            ],
            out_specs=pl.BlockSpec((1, C_out, HW), lambda n: (n, 0, 0)),
        ),
        compiler_params=pltpu.CompilerParams(
            dimension_semantics=("parallel",),
            vmem_limit_bytes=vmem_limit),
    )(x_flat, wblk, params, gmap)

    # (N, C_out, H*W) -> NCHW: pure reshape, no transpose.
    return out_flat.reshape(N, C_out, H, W)


if __name__ == "__main__":
    key = jax.random.PRNGKey(0)
    k = jax.random.split(key, 7)

    N, C_in, H, W = 2, 4, 16, 16
    C_out = 16                 # GroupNorm(8, C_out) requires C_out % 8 == 0
    num_groups = 8
    eps = 1e-5

    x = jax.random.normal(k[0], (N, C_in, H, W), dtype=jnp.float32)
    conv1_w = jax.random.normal(k[1], (C_out, C_in, 3, 3), jnp.float32) * 0.1
    conv1_b = jax.random.normal(k[2], (C_out,), jnp.float32) * 0.1
    conv2_w = jax.random.normal(k[3], (C_out, C_in, 1, 1), jnp.float32) * 0.1
    conv2_b = jax.random.normal(k[4], (C_out,), jnp.float32) * 0.1
    gn_w = 1.0 + 0.1 * jax.random.normal(k[5], (C_out,), jnp.float32)
    gn_b = 0.1 * jax.random.normal(k[6], (C_out,), jnp.float32)

    # ---- pure-JAX reference ----
    ref_c1 = jax.lax.conv_general_dilated(
        x, conv1_w, (1, 1), ((1, 1), (1, 1)),
        dimension_numbers=("NCHW", "OIHW", "NCHW")) + conv1_b[None, :, None, None]
    g = ref_c1.reshape(N, num_groups, C_out // num_groups, H, W)
    mean = g.mean(axis=(2, 3, 4), keepdims=True)
    var = g.var(axis=(2, 3, 4), keepdims=True)
    ref_gn = ((g - mean) / jnp.sqrt(var + eps)).reshape(N, C_out, H, W)
    ref_gn = ref_gn * gn_w[None, :, None, None] + gn_b[None, :, None, None]
    ref_c2 = jnp.einsum("nchw,oc->nohw", x, conv2_w[:, :, 0, 0]) \
        + conv2_b[None, :, None, None]
    pre = ref_gn + ref_c2

    # ---- ELU path ----
    out = input_transition_2d(x, conv1_w, conv1_b, conv2_w, conv2_b, gn_w, gn_b,
                              num_groups=num_groups, eps=eps, elu=True)
    jax.block_until_ready(out)
    ref = jax.nn.elu(pre)
    assert out.shape == (N, C_out, H, W)
    assert jnp.allclose(out, ref, atol=1e-2, rtol=1e-2), \
        float(jnp.max(jnp.abs(out - ref)))

    # ---- PReLU path ----
    prelu_w = jnp.full((C_out,), 0.1, jnp.float32)
    out_p = input_transition_2d(x, conv1_w, conv1_b, conv2_w, conv2_b, gn_w, gn_b,
                                num_groups=num_groups, eps=eps, elu=False,
                                prelu_weight=prelu_w)
    jax.block_until_ready(out_p)
    ref_p = jnp.where(pre > 0, pre, prelu_w[None, :, None, None] * pre)
    assert jnp.allclose(out_p, ref_p, atol=1e-2, rtol=1e-2), \
        float(jnp.max(jnp.abs(out_p - ref_p)))

    print("KERNEL_OK")
</pallas_src>

<mosaic_0001>
module attributes {stable_mosaic.version = 11 : i64} {
  func.func @_input_transition_kernel(%arg0: i32, %arg1: memref<1x4x256xf32, #tpu.memory_space<vmem>>, %arg2: memref<32x72xf32, #tpu.memory_space<vmem>>, %arg3: memref<16x8xf32, #tpu.memory_space<vmem>>, %arg4: memref<16x16xf32, #tpu.memory_space<vmem>>, %arg5: memref<1x16x256xf32, #tpu.memory_space<vmem>>) attributes {dimension_semantics = [#tpu.dimension_semantics<parallel>], iteration_bounds = array<i64: 2>, scalar_prefetch = 0 : i64, scratch_operands = 0 : i64, tpu.core_type = #tpu.core_type<tc>, window_params = [{transform_indices = @transform_0, window_bounds = array<i64: 1, 4, 256>}, {pipeline_mode = #tpu.pipeline_mode<synchronous>, transform_indices = @transform_1, window_bounds = array<i64: 32, 72>}, {pipeline_mode = #tpu.pipeline_mode<synchronous>, transform_indices = @transform_2, window_bounds = array<i64: 16, 8>}, {pipeline_mode = #tpu.pipeline_mode<synchronous>, transform_indices = @transform_3, window_bounds = array<i64: 16, 16>}, {transform_indices = @transform_4, window_bounds = array<i64: 1, 16, 256>}]} {
    %c0 = arith.constant 0 : index
    %c0_0 = arith.constant 0 : index
    %c0_1 = arith.constant 0 : index
    %0 = vector.load %arg1[%c0, %c0_0, %c0_1] : memref<1x4x256xf32, #tpu.memory_space<vmem>>, vector<1x4x256xf32>
    %1 = vector.shape_cast %0 : vector<1x4x256xf32> to vector<4x256xf32>
    %cst = arith.constant 0.000000e+00 : f32
    %2 = vector.broadcast %cst : f32 to vector<4x256xf32>
    %3 = tpu.concatenate %1, %2 in 0 : vector<4x256xf32>, vector<4x256xf32> -> vector<8x256xf32>
    %4 = tpu.iota {dimensions = array<i32: 1>} : vector<1x256xi32>
    %c4_i32 = arith.constant 4 : i32
    %5 = vector.broadcast %c4_i32 : i32 to vector<1x256xi32>
    %6 = arith.shrui %4, %5 : vector<1x256xi32>
    %c15_i32 = arith.constant 15 : i32
    %7 = vector.broadcast %c15_i32 : i32 to vector<1x256xi32>
    %8 = arith.andi %4, %7 : vector<1x256xi32>
    %c17_i32 = arith.constant 17 : i32
    %9 = tpu.dynamic_rotate %3 by %c17_i32 dim 1 : vector<8x256xf32>, i32 -> vector<8x256xf32>
    %c-1_i32 = arith.constant -1 : i32
    %10 = vector.broadcast %c-1_i32 : i32 to vector<1x256xi32>
    %11 = arith.addi %6, %10 : vector<1x256xi32>
    %c0_i32 = arith.constant 0 : i32
    %12 = vector.broadcast %c0_i32 : i32 to vector<1x256xi32>
    %13 = arith.cmpi sge, %11, %12 : vector<1x256xi32>
    %c-1_i32_2 = arith.constant -1 : i32
    %14 = vector.broadcast %c-1_i32_2 : i32 to vector<1x256xi32>
    %15 = arith.addi %6, %14 : vector<1x256xi32>
    %c16_i32 = arith.constant 16 : i32
    %16 = vector.broadcast %c16_i32 : i32 to vector<1x256xi32>
    %17 = arith.cmpi slt, %15, %16 : vector<1x256xi32>
    %18 = arith.andi %13, %17 : vector<1x256xi1>
    %c-1_i32_3 = arith.constant -1 : i32
    %19 = vector.broadcast %c-1_i32_3 : i32 to vector<1x256xi32>
    %20 = arith.addi %8, %19 : vector<1x256xi32>
    %c0_i32_4 = arith.constant 0 : i32
    %21 = vector.broadcast %c0_i32_4 : i32 to vector<1x256xi32>
    %22 = arith.cmpi sge, %20, %21 : vector<1x256xi32>
    %23 = arith.andi %18, %22 : vector<1x256xi1>
    %c-1_i32_5 = arith.constant -1 : i32
    %24 = vector.broadcast %c-1_i32_5 : i32 to vector<1x256xi32>
    %25 = arith.addi %8, %24 : vector<1x256xi32>
    %c16_i32_6 = arith.constant 16 : i32
    %26 = vector.broadcast %c16_i32_6 : i32 to vector<1x256xi32>
    %27 = arith.cmpi slt, %25, %26 : vector<1x256xi32>
    %28 = arith.andi %23, %27 : vector<1x256xi1>
    %cst_7 = arith.constant 0.000000e+00 : f32
    %29 = vector.shape_cast %28 : vector<1x256xi1> to vector<1x256xi1>
    %30 = vector.broadcast %29 : vector<1x256xi1> to vector<8x256xi1>
    %31 = vector.broadcast %cst_7 : f32 to vector<8x256xf32>
    %32 = arith.select %30, %9, %31 : vector<8x256xi1>, vector<8x256xf32>
    %c16_i32_8 = arith.constant 16 : i32
    %33 = tpu.dynamic_rotate %3 by %c16_i32_8 dim 1 : vector<8x256xf32>, i32 -> vector<8x256xf32>
    %c-1_i32_9 = arith.constant -1 : i32
    %34 = vector.broadcast %c-1_i32_9 : i32 to vector<1x256xi32>
    %35 = arith.addi %6, %34 : vector<1x256xi32>
    %c0_i32_10 = arith.constant 0 : i32
    %36 = vector.broadcast %c0_i32_10 : i32 to vector<1x256xi32>
    %37 = arith.cmpi sge, %35, %36 : vector<1x256xi32>
    %c-1_i32_11 = arith.constant -1 : i32
    %38 = vector.broadcast %c-1_i32_11 : i32 to vector<1x256xi32>
    %39 = arith.addi %6, %38 : vector<1x256xi32>
    %c16_i32_12 = arith.constant 16 : i32
    %40 = vector.broadcast %c16_i32_12 : i32 to vector<1x256xi32>
    %41 = arith.cmpi slt, %39, %40 : vector<1x256xi32>
    %42 = arith.andi %37, %41 : vector<1x256xi1>
    %c0_i32_13 = arith.constant 0 : i32
    %43 = vector.broadcast %c0_i32_13 : i32 to vector<1x256xi32>
    %44 = arith.addi %8, %43 : vector<1x256xi32>
    %c0_i32_14 = arith.constant 0 : i32
    %45 = vector.broadcast %c0_i32_14 : i32 to vector<1x256xi32>
    %46 = arith.cmpi sge, %44, %45 : vector<1x256xi32>
    %47 = arith.andi %42, %46 : vector<1x256xi1>
    %c0_i32_15 = arith.constant 0 : i32
    %48 = vector.broadcast %c0_i32_15 : i32 to vector<1x256xi32>
    %49 = arith.addi %8, %48 : vector<1x256xi32>
    %c16_i32_16 = arith.constant 16 : i32
    %50 = vector.broadcast %c16_i32_16 : i32 to vector<1x256xi32>
    %51 = arith.cmpi slt, %49, %50 : vector<1x256xi32>
    %52 = arith.andi %47, %51 : vector<1x256xi1>
    %cst_17 = arith.constant 0.000000e+00 : f32
    %53 = vector.shape_cast %52 : vector<1x256xi1> to vector<1x256xi1>
    %54 = vector.broadcast %53 : vector<1x256xi1> to vector<8x256xi1>
    %55 = vector.broadcast %cst_17 : f32 to vector<8x256xf32>
    %56 = arith.select %54, %33, %55 : vector<8x256xi1>, vector<8x256xf32>
    %c15_i32_18 = arith.constant 15 : i32
    %57 = tpu.dynamic_rotate %3 by %c15_i32_18 dim 1 : vector<8x256xf32>, i32 -> vector<8x256xf32>
    %c-1_i32_19 = arith.constant -1 : i32
    %58 = vector.broadcast %c-1_i32_19 : i32 to vector<1x256xi32>
    %59 = arith.addi %6, %58 : vector<1x256xi32>
    %c0_i32_20 = arith.constant 0 : i32
    %60 = vector.broadcast %c0_i32_20 : i32 to vector<1x256xi32>
    %61 = arith.cmpi sge, %59, %60 : vector<1x256xi32>
    %c-1_i32_21 = arith.constant -1 : i32
    %62 = vector.broadcast %c-1_i32_21 : i32 to vector<1x256xi32>
    %63 = arith.addi %6, %62 : vector<1x256xi32>
    %c16_i32_22 = arith.constant 16 : i32
    %64 = vector.broadcast %c16_i32_22 : i32 to vector<1x256xi32>
    %65 = arith.cmpi slt, %63, %64 : vector<1x256xi32>
    %66 = arith.andi %61, %65 : vector<1x256xi1>
    %c1_i32 = arith.constant 1 : i32
    %67 = vector.broadcast %c1_i32 : i32 to vector<1x256xi32>
    %68 = arith.addi %8, %67 : vector<1x256xi32>
    %c0_i32_23 = arith.constant 0 : i32
    %69 = vector.broadcast %c0_i32_23 : i32 to vector<1x256xi32>
    %70 = arith.cmpi sge, %68, %69 : vector<1x256xi32>
    %71 = arith.andi %66, %70 : vector<1x256xi1>
    %c1_i32_24 = arith.constant 1 : i32
    %72 = vector.broadcast %c1_i32_24 : i32 to vector<1x256xi32>
    %73 = arith.addi %8, %72 : vector<1x256xi32>
    %c16_i32_25 = arith.constant 16 : i32
    %74 = vector.broadcast %c16_i32_25 : i32 to vector<1x256xi32>
    %75 = arith.cmpi slt, %73, %74 : vector<1x256xi32>
    %76 = arith.andi %71, %75 : vector<1x256xi1>
    %cst_26 = arith.constant 0.000000e+00 : f32
    %77 = vector.shape_cast %76 : vector<1x256xi1> to vector<1x256xi1>
    %78 = vector.broadcast %77 : vector<1x256xi1> to vector<8x256xi1>
    %79 = vector.broadcast %cst_26 : f32 to vector<8x256xf32>
    %80 = arith.select %78, %57, %79 : vector<8x256xi1>, vector<8x256xf32>
    %c1_i32_27 = arith.constant 1 : i32
    %81 = tpu.dynamic_rotate %3 by %c1_i32_27 dim 1 : vector<8x256xf32>, i32 -> vector<8x256xf32>
    %c0_i32_28 = arith.constant 0 : i32
    %82 = vector.broadcast %c0_i32_28 : i32 to vector<1x256xi32>
    %83 = arith.addi %6, %82 : vector<1x256xi32>
    %c0_i32_29 = arith.constant 0 : i32
    %84 = vector.broadcast %c0_i32_29 : i32 to vector<1x256xi32>
    %85 = arith.cmpi sge, %83, %84 : vector<1x256xi32>
    %c0_i32_30 = arith.constant 0 : i32
    %86 = vector.broadcast %c0_i32_30 : i32 to vector<1x256xi32>
    %87 = arith.addi %6, %86 : vector<1x256xi32>
    %c16_i32_31 = arith.constant 16 : i32
    %88 = vector.broadcast %c16_i32_31 : i32 to vector<1x256xi32>
    %89 = arith.cmpi slt, %87, %88 : vector<1x256xi32>
    %90 = arith.andi %85, %89 : vector<1x256xi1>
    %c-1_i32_32 = arith.constant -1 : i32
    %91 = vector.broadcast %c-1_i32_32 : i32 to vector<1x256xi32>
    %92 = arith.addi %8, %91 : vector<1x256xi32>
    %c0_i32_33 = arith.constant 0 : i32
    %93 = vector.broadcast %c0_i32_33 : i32 to vector<1x256xi32>
    %94 = arith.cmpi sge, %92, %93 : vector<1x256xi32>
    %95 = arith.andi %90, %94 : vector<1x256xi1>
    %c-1_i32_34 = arith.constant -1 : i32
    %96 = vector.broadcast %c-1_i32_34 : i32 to vector<1x256xi32>
    %97 = arith.addi %8, %96 : vector<1x256xi32>
    %c16_i32_35 = arith.constant 16 : i32
    %98 = vector.broadcast %c16_i32_35 : i32 to vector<1x256xi32>
    %99 = arith.cmpi slt, %97, %98 : vector<1x256xi32>
    %100 = arith.andi %95, %99 : vector<1x256xi1>
    %cst_36 = arith.constant 0.000000e+00 : f32
    %101 = vector.shape_cast %100 : vector<1x256xi1> to vector<1x256xi1>
    %102 = vector.broadcast %101 : vector<1x256xi1> to vector<8x256xi1>
    %103 = vector.broadcast %cst_36 : f32 to vector<8x256xf32>
    %104 = arith.select %102, %81, %103 : vector<8x256xi1>, vector<8x256xf32>
    %c255_i32 = arith.constant 255 : i32
    %105 = tpu.dynamic_rotate %3 by %c255_i32 dim 1 : vector<8x256xf32>, i32 -> vector<8x256xf32>
    %c0_i32_37 = arith.constant 0 : i32
    %106 = vector.broadcast %c0_i32_37 : i32 to vector<1x256xi32>
    %107 = arith.addi %6, %106 : vector<1x256xi32>
    %c0_i32_38 = arith.constant 0 : i32
    %108 = vector.broadcast %c0_i32_38 : i32 to vector<1x256xi32>
    %109 = arith.cmpi sge, %107, %108 : vector<1x256xi32>
    %c0_i32_39 = arith.constant 0 : i32
    %110 = vector.broadcast %c0_i32_39 : i32 to vector<1x256xi32>
    %111 = arith.addi %6, %110 : vector<1x256xi32>
    %c16_i32_40 = arith.constant 16 : i32
    %112 = vector.broadcast %c16_i32_40 : i32 to vector<1x256xi32>
    %113 = arith.cmpi slt, %111, %112 : vector<1x256xi32>
    %114 = arith.andi %109, %113 : vector<1x256xi1>
    %c1_i32_41 = arith.constant 1 : i32
    %115 = vector.broadcast %c1_i32_41 : i32 to vector<1x256xi32>
    %116 = arith.addi %8, %115 : vector<1x256xi32>
    %c0_i32_42 = arith.constant 0 : i32
    %117 = vector.broadcast %c0_i32_42 : i32 to vector<1x256xi32>
    %118 = arith.cmpi sge, %116, %117 : vector<1x256xi32>
    %119 = arith.andi %114, %118 : vector<1x256xi1>
    %c1_i32_43 = arith.constant 1 : i32
    %120 = vector.broadcast %c1_i32_43 : i32 to vector<1x256xi32>
    %121 = arith.addi %8, %120 : vector<1x256xi32>
    %c16_i32_44 = arith.constant 16 : i32
    %122 = vector.broadcast %c16_i32_44 : i32 to vector<1x256xi32>
    %123 = arith.cmpi slt, %121, %122 : vector<1x256xi32>
    %124 = arith.andi %119, %123 : vector<1x256xi1>
    %cst_45 = arith.constant 0.000000e+00 : f32
    %125 = vector.shape_cast %124 : vector<1x256xi1> to vector<1x256xi1>
    %126 = vector.broadcast %125 : vector<1x256xi1> to vector<8x256xi1>
    %127 = vector.broadcast %cst_45 : f32 to vector<8x256xf32>
    %128 = arith.select %126, %105, %127 : vector<8x256xi1>, vector<8x256xf32>
    %c241_i32 = arith.constant 241 : i32
    %129 = tpu.dynamic_rotate %3 by %c241_i32 dim 1 : vector<8x256xf32>, i32 -> vector<8x256xf32>
    %c1_i32_46 = arith.constant 1 : i32
    %130 = vector.broadcast %c1_i32_46 : i32 to vector<1x256xi32>
    %131 = arith.addi %6, %130 : vector<1x256xi32>
    %c0_i32_47 = arith.constant 0 : i32
    %132 = vector.broadcast %c0_i32_47 : i32 to vector<1x256xi32>
    %133 = arith.cmpi sge, %131, %132 : vector<1x256xi32>
    %c1_i32_48 = arith.constant 1 : i32
    %134 = vector.broadcast %c1_i32_48 : i32 to vector<1x256xi32>
    %135 = arith.addi %6, %134 : vector<1x256xi32>
    %c16_i32_49 = arith.constant 16 : i32
    %136 = vector.broadcast %c16_i32_49 : i32 to vector<1x256xi32>
    %137 = arith.cmpi slt, %135, %136 : vector<1x256xi32>
    %138 = arith.andi %133, %137 : vector<1x256xi1>
    %c-1_i32_50 = arith.constant -1 : i32
    %139 = vector.broadcast %c-1_i32_50 : i32 to vector<1x256xi32>
    %140 = arith.addi %8, %139 : vector<1x256xi32>
    %c0_i32_51 = arith.constant 0 : i32
    %141 = vector.broadcast %c0_i32_51 : i32 to vector<1x256xi32>
    %142 = arith.cmpi sge, %140, %141 : vector<1x256xi32>
    %143 = arith.andi %138, %142 : vector<1x256xi1>
    %c-1_i32_52 = arith.constant -1 : i32
    %144 = vector.broadcast %c-1_i32_52 : i32 to vector<1x256xi32>
    %145 = arith.addi %8, %144 : vector<1x256xi32>
    %c16_i32_53 = arith.constant 16 : i32
    %146 = vector.broadcast %c16_i32_53 : i32 to vector<1x256xi32>
    %147 = arith.cmpi slt, %145, %146 : vector<1x256xi32>
    %148 = arith.andi %143, %147 : vector<1x256xi1>
    %cst_54 = arith.constant 0.000000e+00 : f32
    %149 = vector.shape_cast %148 : vector<1x256xi1> to vector<1x256xi1>
    %150 = vector.broadcast %149 : vector<1x256xi1> to vector<8x256xi1>
    %151 = vector.broadcast %cst_54 : f32 to vector<8x256xf32>
    %152 = arith.select %150, %129, %151 : vector<8x256xi1>, vector<8x256xf32>
    %c240_i32 = arith.constant 240 : i32
    %153 = tpu.dynamic_rotate %3 by %c240_i32 dim 1 : vector<8x256xf32>, i32 -> vector<8x256xf32>
    %c1_i32_55 = arith.constant 1 : i32
    %154 = vector.broadcast %c1_i32_55 : i32 to vector<1x256xi32>
    %155 = arith.addi %6, %154 : vector<1x256xi32>
    %c0_i32_56 = arith.constant 0 : i32
    %156 = vector.broadcast %c0_i32_56 : i32 to vector<1x256xi32>
    %157 = arith.cmpi sge, %155, %156 : vector<1x256xi32>
    %c1_i32_57 = arith.constant 1 : i32
    %158 = vector.broadcast %c1_i32_57 : i32 to vector<1x256xi32>
    %159 = arith.addi %6, %158 : vector<1x256xi32>
    %c16_i32_58 = arith.constant 16 : i32
    %160 = vector.broadcast %c16_i32_58 : i32 to vector<1x256xi32>
    %161 = arith.cmpi slt, %159, %160 : vector<1x256xi32>
    %162 = arith.andi %157, %161 : vector<1x256xi1>
    %c0_i32_59 = arith.constant 0 : i32
    %163 = vector.broadcast %c0_i32_59 : i32 to vector<1x256xi32>
    %164 = arith.addi %8, %163 : vector<1x256xi32>
    %c0_i32_60 = arith.constant 0 : i32
    %165 = vector.broadcast %c0_i32_60 : i32 to vector<1x256xi32>
    %166 = arith.cmpi sge, %164, %165 : vector<1x256xi32>
    %167 = arith.andi %162, %166 : vector<1x256xi1>
    %c0_i32_61 = arith.constant 0 : i32
    %168 = vector.broadcast %c0_i32_61 : i32 to vector<1x256xi32>
    %169 = arith.addi %8, %168 : vector<1x256xi32>
    %c16_i32_62 = arith.constant 16 : i32
    %170 = vector.broadcast %c16_i32_62 : i32 to vector<1x256xi32>
    %171 = arith.cmpi slt, %169, %170 : vector<1x256xi32>
    %172 = arith.andi %167, %171 : vector<1x256xi1>
    %cst_63 = arith.constant 0.000000e+00 : f32
    %173 = vector.shape_cast %172 : vector<1x256xi1> to vector<1x256xi1>
    %174 = vector.broadcast %173 : vector<1x256xi1> to vector<8x256xi1>
    %175 = vector.broadcast %cst_63 : f32 to vector<8x256xf32>
    %176 = arith.select %174, %153, %175 : vector<8x256xi1>, vector<8x256xf32>
    %c239_i32 = arith.constant 239 : i32
    %177 = tpu.dynamic_rotate %3 by %c239_i32 dim 1 : vector<8x256xf32>, i32 -> vector<8x256xf32>
    %c1_i32_64 = arith.constant 1 : i32
    %178 = vector.broadcast %c1_i32_64 : i32 to vector<1x256xi32>
    %179 = arith.addi %6, %178 : vector<1x256xi32>
    %c0_i32_65 = arith.constant 0 : i32
    %180 = vector.broadcast %c0_i32_65 : i32 to vector<1x256xi32>
    %181 = arith.cmpi sge, %179, %180 : vector<1x256xi32>
    %c1_i32_66 = arith.constant 1 : i32
    %182 = vector.broadcast %c1_i32_66 : i32 to vector<1x256xi32>
    %183 = arith.addi %6, %182 : vector<1x256xi32>
    %c16_i32_67 = arith.constant 16 : i32
    %184 = vector.broadcast %c16_i32_67 : i32 to vector<1x256xi32>
    %185 = arith.cmpi slt, %183, %184 : vector<1x256xi32>
    %186 = arith.andi %181, %185 : vector<1x256xi1>
    %c1_i32_68 = arith.constant 1 : i32
    %187 = vector.broadcast %c1_i32_68 : i32 to vector<1x256xi32>
    %188 = arith.addi %8, %187 : vector<1x256xi32>
    %c0_i32_69 = arith.constant 0 : i32
    %189 = vector.broadcast %c0_i32_69 : i32 to vector<1x256xi32>
    %190 = arith.cmpi sge, %188, %189 : vector<1x256xi32>
    %191 = arith.andi %186, %190 : vector<1x256xi1>
    %c1_i32_70 = arith.constant 1 : i32
    %192 = vector.broadcast %c1_i32_70 : i32 to vector<1x256xi32>
    %193 = arith.addi %8, %192 : vector<1x256xi32>
    %c16_i32_71 = arith.constant 16 : i32
    %194 = vector.broadcast %c16_i32_71 : i32 to vector<1x256xi32>
    %195 = arith.cmpi slt, %193, %194 : vector<1x256xi32>
    %196 = arith.andi %191, %195 : vector<1x256xi1>
    %cst_72 = arith.constant 0.000000e+00 : f32
    %197 = vector.shape_cast %196 : vector<1x256xi1> to vector<1x256xi1>
    %198 = vector.broadcast %197 : vector<1x256xi1> to vector<8x256xi1>
    %199 = vector.broadcast %cst_72 : f32 to vector<8x256xf32>
    %200 = arith.select %198, %177, %199 : vector<8x256xi1>, vector<8x256xf32>
    %201 = tpu.concatenate %32, %56, %80, %104, %3, %128, %152, %176, %200 in 0 : vector<8x256xf32>, vector<8x256xf32>, vector<8x256xf32>, vector<8x256xf32>, vector<8x256xf32>, vector<8x256xf32>, vector<8x256xf32>, vector<8x256xf32>, vector<8x256xf32> -> vector<72x256xf32>
    %c0_73 = arith.constant 0 : index
    %c0_74 = arith.constant 0 : index
    %202 = vector.load %arg2[%c0_73, %c0_74] : memref<32x72xf32, #tpu.memory_space<vmem>>, vector<32x72xf32>
    %cst_75 = arith.constant dense<0.000000e+00> : vector<32x256xf32>
    %203 = tpu.matmul %202, %201, %cst_75 {dimension_numbers = #tpu.dot_dimension_numbers<[1], [0], [0], [1], [0, 0, 1, 1], [], []>} : vector<32x72xf32>, vector<72x256xf32>, vector<32x256xf32> -> vector<32x256xf32>
    %204 = vector.extract_strided_slice %203 {offsets = [0, 0], sizes = [16, 256], strides = [1, 1]} : vector<32x256xf32> to vector<16x256xf32>
    %205 = vector.extract_strided_slice %203 {offsets = [16, 0], sizes = [16, 256], strides = [1, 1]} : vector<32x256xf32> to vector<16x256xf32>
    %c0_76 = arith.constant 0 : index
    %c0_77 = arith.constant 0 : index
    %206 = vector.load %arg3[%c0_76, %c0_77] : memref<16x8xf32, #tpu.memory_space<vmem>>, vector<16x8xf32>
    %207 = vector.extract_strided_slice %206 {offsets = [0, 0], sizes = [16, 1], strides = [1, 1]} : vector<16x8xf32> to vector<16x1xf32>
    %208 = vector.extract_strided_slice %206 {offsets = [0, 1], sizes = [16, 1], strides = [1, 1]} : vector<16x8xf32> to vector<16x1xf32>
    %209 = vector.extract_strided_slice %206 {offsets = [0, 2], sizes = [16, 1], strides = [1, 1]} : vector<16x8xf32> to vector<16x1xf32>
    %210 = vector.extract_strided_slice %206 {offsets = [0, 3], sizes = [16, 1], strides = [1, 1]} : vector<16x8xf32> to vector<16x1xf32>
    %cst_78 = arith.constant dense<0.000000e+00> : vector<16xf32>
    %211 = vector.multi_reduction <add>, %204, %cst_78 [1] : vector<16x256xf32> to vector<16xf32>
    %212 = vector.shape_cast %211 : vector<16xf32> to vector<16x1xf32>
    %213 = arith.mulf %204, %204 : vector<16x256xf32>
    %cst_79 = arith.constant dense<0.000000e+00> : vector<16xf32>
    %214 = vector.multi_reduction <add>, %213, %cst_79 [1] : vector<16x256xf32> to vector<16xf32>
    %215 = vector.shape_cast %214 : vector<16xf32> to vector<16x1xf32>
    %cst_80 = arith.constant 2.560000e+02 : f32
    %216 = vector.broadcast %cst_80 : f32 to vector<16x1xf32>
    %217 = arith.mulf %216, %207 : vector<16x1xf32>
    %218 = arith.addf %212, %217 : vector<16x1xf32>
    %cst_81 = arith.constant 2.000000e+00 : f32
    %219 = vector.broadcast %cst_81 : f32 to vector<16x1xf32>
    %220 = arith.mulf %219, %207 : vector<16x1xf32>
    %221 = arith.mulf %220, %212 : vector<16x1xf32>
    %222 = arith.addf %215, %221 : vector<16x1xf32>
    %223 = arith.mulf %207, %207 : vector<16x1xf32>
    %cst_82 = arith.constant 2.560000e+02 : f32
    %224 = vector.broadcast %cst_82 : f32 to vector<16x1xf32>
    %225 = arith.mulf %224, %223 : vector<16x1xf32>
    %226 = arith.addf %222, %225 : vector<16x1xf32>
    %c0_83 = arith.constant 0 : index
    %c0_84 = arith.constant 0 : index
    %227 = vector.load %arg4[%c0_83, %c0_84] : memref<16x16xf32, #tpu.memory_space<vmem>>, vector<16x16xf32>
    %cst_85 = arith.constant dense<0.000000e+00> : vector<16x1xf32>
    %228 = tpu.matmul %227, %218, %cst_85 {dimension_numbers = #tpu.dot_dimension_numbers<[1], [0], [0], [1], [0, 0, 1, 1], [], []>} : vector<16x16xf32>, vector<16x1xf32>, vector<16x1xf32> -> vector<16x1xf32>
    %c0_86 = arith.constant 0 : index
    %c0_87 = arith.constant 0 : index
    %229 = vector.load %arg4[%c0_86, %c0_87] : memref<16x16xf32, #tpu.memory_space<vmem>>, vector<16x16xf32>
    %cst_88 = arith.constant dense<0.000000e+00> : vector<16x1xf32>
    %230 = tpu.matmul %229, %226, %cst_88 {dimension_numbers = #tpu.dot_dimension_numbers<[1], [0], [0], [1], [0, 0, 1, 1], [], []>} : vector<16x16xf32>, vector<16x1xf32>, vector<16x1xf32> -> vector<16x1xf32>
    %cst_89 = arith.constant 0.001953125 : f32
    %231 = vector.broadcast %cst_89 : f32 to vector<16x1xf32>
    %232 = arith.mulf %228, %231 : vector<16x1xf32>
    %cst_90 = arith.constant 0.001953125 : f32
    %233 = vector.broadcast %cst_90 : f32 to vector<16x1xf32>
    %234 = arith.mulf %230, %233 : vector<16x1xf32>
    %235 = arith.mulf %232, %232 : vector<16x1xf32>
    %236 = arith.subf %234, %235 : vector<16x1xf32>
    %cst_91 = arith.constant 0.000000e+00 : f32
    %237 = vector.broadcast %cst_91 : f32 to vector<16x1xf32>
    %238 = arith.maximumf %236, %237 : vector<16x1xf32>
    %cst_92 = arith.constant 9.99999974E-6 : f32
    %239 = vector.broadcast %cst_92 : f32 to vector<16x1xf32>
    %240 = arith.addf %238, %239 : vector<16x1xf32>
    %241 = math.rsqrt %240 : vector<16x1xf32>
    %242 = arith.mulf %209, %241 : vector<16x1xf32>
    %243 = arith.subf %207, %232 : vector<16x1xf32>
    %244 = arith.mulf %242, %243 : vector<16x1xf32>
    %245 = arith.addf %210, %244 : vector<16x1xf32>
    %246 = arith.addf %245, %208 : vector<16x1xf32>
    %247 = vector.broadcast %242 : vector<16x1xf32> to vector<16x256xf32>
    %248 = arith.mulf %204, %247 : vector<16x256xf32>
    %249 = arith.addf %248, %205 : vector<16x256xf32>
    %250 = vector.broadcast %246 : vector<16x1xf32> to vector<16x256xf32>
    %251 = arith.addf %249, %250 : vector<16x256xf32>
    %cst_93 = arith.constant 0.000000e+00 : f32
    %252 = vector.broadcast %cst_93 : f32 to vector<16x256xf32>
    %253 = arith.cmpf ogt, %251, %252 : vector<16x256xf32>
    %cst_94 = arith.constant 0.000000e+00 : f32
    %254 = vector.broadcast %cst_94 : f32 to vector<16x256xf32>
    %255 = arith.minimumf %251, %254 : vector<16x256xf32>
    %256 = math.exp %255 : vector<16x256xf32>
    %cst_95 = arith.constant 1.000000e+00 : f32
    %257 = vector.broadcast %cst_95 : f32 to vector<16x256xf32>
    %258 = arith.subf %256, %257 : vector<16x256xf32>
    %259 = arith.select %253, %251, %258 : vector<16x256xi1>, vector<16x256xf32>
    %c0_96 = arith.constant 0 : index
    %c0_97 = arith.constant 0 : index
    %c0_98 = arith.constant 0 : index
    %260 = vector.load %arg5[%c0_96, %c0_97, %c0_98] : memref<1x16x256xf32, #tpu.memory_space<vmem>>, vector<1x16x256xf32>
    %261 = vector.shape_cast %260 : vector<1x16x256xf32> to vector<16x256xf32>
    %262 = vector.shape_cast %259 : vector<16x256xf32> to vector<1x16x256xf32>
    tpu.vector_store %arg5[%c0_96, %c0_97, %c0_98], %262 {strides = array<i32>} : memref<1x16x256xf32, #tpu.memory_space<vmem>>, vector<1x16x256xf32>,
    return
  }
  func.func @transform_0(%arg0: i32) -> (i32, i32, i32) {
    %c0_i32 = arith.constant 0 : i32
    %c0_i32_0 = arith.constant 0 : i32
    %c0_i32_1 = arith.constant 0 : i32
    return %arg0, %c0_i32, %c0_i32_0 : i32, i32, i32
  }
  func.func @transform_1(%arg0: i32) -> (i32, i32) {
    %c0_i32 = arith.constant 0 : i32
    %c0_i32_0 = arith.constant 0 : i32
    %c0_i32_1 = arith.constant 0 : i32
    return %c0_i32, %c0_i32_0 : i32, i32
  }
  func.func @transform_2(%arg0: i32) -> (i32, i32) {
    %c0_i32 = arith.constant 0 : i32
    %c0_i32_0 = arith.constant 0 : i32
    %c0_i32_1 = arith.constant 0 : i32
    return %c0_i32, %c0_i32_0 : i32, i32
  }
  func.func @transform_3(%arg0: i32) -> (i32, i32) {
    %c0_i32 = arith.constant 0 : i32
    %c0_i32_0 = arith.constant 0 : i32
    %c0_i32_1 = arith.constant 0 : i32
    return %c0_i32, %c0_i32_0 : i32, i32
  }
  func.func @transform_4(%arg0: i32) -> (i32, i32, i32) {
    %c0_i32 = arith.constant 0 : i32
    %c0_i32_0 = arith.constant 0 : i32
    %c0_i32_1 = arith.constant 0 : i32
    return %arg0, %c0_i32, %c0_i32_0 : i32, i32, i32
  }
}

</mosaic_0001>

<llo_original>
// kernel: tpu_custom_call.1
$region0: #{tpu_custom_call.1}
  #allocation0 [shape = 'u32[]', space=smem, size = 0x4, offset = 0x4, fixed_abs, tag = 'smem constant byte address 0x4 - core index']
  #allocation1 [shape = 'u32[72,128]{1,0:T(1,128)}', space=vmem, size = 0x9000, scoped, tag = 'internal scratch']
  %s0 = inlined_call_operand.vmem [shape: f32[2,4,256], index: 0, kind: input, shape index: {}]
  %s1 = inlined_call_operand.hbm [shape: f32[32,72], index: 1, kind: input, shape index: {}]
  %s2 = inlined_call_operand.vmem [shape: f32[16,8], index: 2, kind: input, shape index: {}]
  %s3 = inlined_call_operand.hbm [shape: f32[16,16], index: 3, kind: input, shape index: {}]
  %s4 = inlined_call_operand.hbm [shape: f32[2,16,256], index: 4, kind: output, shape index: {}]
  %s5 = sld [smem:[#allocation0]]
  $region57: #{tpu_custom_call.1} parent=0
    _
  %s7 = ssub.s32 1, %s5
  %s8 = scalar_select 0, %s7, %s5
  $region1: #{tpu_custom_call.1} parent=0
    #allocation2 [shape = 'u8[16384]{0}', space=vmem, size = 0x4000, scoped, tag = 'input window, operand 1, single buffered']
    #allocation3 [shape = 's32[2]{0}', space=sflag, size = 0x8, scoped, tag = 'scoped memory for tpu_custom_call.1']
    #allocation4 [shape = 's32[2]{0}', space=sflag, size = 0x8, scoped, tag = 'scoped memory for tpu_custom_call.1']
    #allocation5 [shape = 'u8[8192]{0}', space=vmem, size = 0x2000, scoped, tag = 'input window, operand 3, single buffered']
    #allocation6 [shape = 's32[1]{0}', space=sflag, size = 0x4, scoped, tag = 'scoped memory for tpu_custom_call.1']
    #allocation7 [shape = 'u8[32768]{0}', space=vmem, size = 0x8000, scoped, tag = 'output window, operand 0']
    %9 = vsyncpa [#allocation3], 0
    %10 = vsyncpa [#allocation6], 0
    %11 = vsyncpa [#allocation4], 0
    %s12 = scalar_lea.sflag [#allocation4], 1
    %13 = vsyncpa %s12, 0
    loop: start=0, step=1, limit=4
    $region2: #{tpu_custom_call.1} parent=1 // loop_pre_header
      _
    $region3: #{tpu_custom_call.1} parent=1 // loop_header
      %s15 = sphi 0, %s19
      %p16 = scmp.ge.s32.totalorder %s15, 4
      %s25 = sphi 0, %s27
      %s28 = sphi 0, %s25
      %s29 = sphi 0, %s28
      %s45 = sphi 0, %s29
      %s49 = sphi 0, %s49
      %s51 = sphi 0, %s49
      %s52 = sphi 0, %s51
      %s66 = sphi 0, %s52
      %s70 = sphi 0, %s70
      %s72 = sphi 0, %s70
      %s73 = sphi 0, %s72
      %s87 = sphi 0, %s73
      %s91 = sphi 0, %s91
      %s93 = sphi 0, %s91
      %s94 = sphi 0, %s93
      %s108 = sphi 0, %s94
      %s114 = sphi 0, %s116
      %s117 = sphi 0, %s114
      %s118 = sphi 0, %s117
      %s134 = sphi 0, %s118
    $region4: #{tpu_custom_call.1} parent=1 // loop_header_branch
      %18 = sbr.rel (%p16) target = $region8
    $region5: #{tpu_custom_call.1} parent=1 // loop_body
      %s20 = ssub.s32 %s15, 1
      %s21 = ssub.s32 %s15, 2
      %s22 = sadd.s32 %s15, 1
      %s23 = ssub.s32 %s15, %s22
      %p24 = scmp.eq.s32.totalorder %s23, 0
      %s26 = sadd.s32 %s25, 1
      %s27 = scalar_select %p24, %s25, %s26
      %p30 = pneg %p24
      %p31 = scmp.eq.s32.totalorder %s15, 1
      %p32 = por %p30, %p31
      %p33 = scmp.ne.s32.totalorder %s25, %s28
      %p34 = scmp.eq.s32.totalorder %s15, 0
      %p35 = por %p33, %p34
      %p36 = scmp.ne.s32.totalorder %s25, %s28
      %p37 = scmp.eq.s32.totalorder %s20, 1
      %p38 = por %p36, %p37
      %p39 = scmp.ne.s32.totalorder %s28, %s29
      %p40 = scmp.eq.s32.totalorder %s20, 0
      %p41 = por %p39, %p40
      %p42 = scmp.ne.s32.totalorder %s28, %s29
      %p43 = scmp.eq.s32.totalorder %s21, 1
      %p44 = por %p42, %p43
      %p46 = scmp.ne.s32.totalorder %s29, %s45
      %p47 = scmp.eq.s32.totalorder %s21, 0
      %p48 = por %p46, %p47
      %s50 = sadd.s32 %s49, 1
      %p53 = scmp.eq.s32.totalorder %s15, 1
      %p54 = scmp.ne.s32.totalorder %s49, %s51
      %p55 = scmp.eq.s32.totalorder %s15, 0
      %p56 = por %p54, %p55
      %p57 = scmp.ne.s32.totalorder %s49, %s51
      %p58 = scmp.eq.s32.totalorder %s20, 1
      %p59 = por %p57, %p58
      %p60 = scmp.ne.s32.totalorder %s51, %s52
      %p61 = scmp.eq.s32.totalorder %s20, 0
      %p62 = por %p60, %p61
      %p63 = scmp.ne.s32.totalorder %s51, %s52
      %p64 = scmp.eq.s32.totalorder %s21, 1
      %p65 = por %p63, %p64
      %p67 = scmp.ne.s32.totalorder %s52, %s66
      %p68 = scmp.eq.s32.totalorder %s21, 0
      %p69 = por %p67, %p68
      %s71 = sadd.s32 %s70, 1
      %p74 = scmp.eq.s32.totalorder %s15, 1
      %p75 = scmp.ne.s32.totalorder %s70, %s72
      %p76 = scmp.eq.s32.totalorder %s15, 0
      %p77 = por %p75, %p76
      %p78 = scmp.ne.s32.totalorder %s70, %s72
      %p79 = scmp.eq.s32.totalorder %s20, 1
      %p80 = por %p78, %p79
      %p81 = scmp.ne.s32.totalorder %s72, %s73
      %p82 = scmp.eq.s32.totalorder %s20, 0
      %p83 = por %p81, %p82
      %p84 = scmp.ne.s32.totalorder %s72, %s73
      %p85 = scmp.eq.s32.totalorder %s21, 1
      %p86 = por %p84, %p85
      %p88 = scmp.ne.s32.totalorder %s73, %s87
      %p89 = scmp.eq.s32.totalorder %s21, 0
      %p90 = por %p88, %p89
      %s92 = sadd.s32 %s91, 1
      %p95 = scmp.eq.s32.totalorder %s15, 1
      %p96 = scmp.ne.s32.totalorder %s91, %s93
      %p97 = scmp.eq.s32.totalorder %s15, 0
      %p98 = por %p96, %p97
      %p99 = scmp.ne.s32.totalorder %s91, %s93
      %p100 = scmp.eq.s32.totalorder %s20, 1
      %p101 = por %p99, %p100
      %p102 = scmp.ne.s32.totalorder %s93, %s94
      %p103 = scmp.eq.s32.totalorder %s20, 0
      %p104 = por %p102, %p103
      %p105 = scmp.ne.s32.totalorder %s93, %s94
      %p106 = scmp.eq.s32.totalorder %s21, 1
      %p107 = por %p105, %p106
      %p109 = scmp.ne.s32.totalorder %s94, %s108
      %p110 = scmp.eq.s32.totalorder %s21, 0
      %p111 = por %p109, %p110
      %s112 = ssub.s32 %s15, %s22
      %p113 = scmp.eq.s32.totalorder %s112, 0
      %s115 = sadd.s32 %s114, 1
      %s116 = scalar_select %p113, %s114, %s115
      %p119 = pneg %p113
      %p120 = scmp.eq.s32.totalorder %s15, 1
      %p121 = por %p119, %p120
      %p122 = scmp.ne.s32.totalorder %s114, %s117
      %p123 = scmp.eq.s32.totalorder %s15, 0
      %p124 = por %p122, %p123
      %p125 = scmp.ne.s32.totalorder %s114, %s117
      %p126 = scmp.eq.s32.totalorder %s20, 1
      %p127 = por %p125, %p126
      %p128 = scmp.ne.s32.totalorder %s117, %s118
      %p129 = scmp.eq.s32.totalorder %s20, 0
      %p130 = por %p128, %p129
      %p131 = scmp.ne.s32.totalorder %s117, %s118
      %p132 = scmp.eq.s32.totalorder %s21, 1
      %p133 = por %p131, %p132
      %p135 = scmp.ne.s32.totalorder %s118, %s134
      %p136 = scmp.eq.s32.totalorder %s21, 0
      %p137 = por %p135, %p136
      %p138 = scmp.le.s32.totalorder 1, %s15
      %p139 = scmp.lt.s32.totalorder %s15, 3
      %p140 = pnand %p138, %p139
      %p141 = pneg %p140
      // Predicated region
      $region9: #{tpu_custom_call.1} parent=5 // pred_check
        _
      $region10: #{tpu_custom_call.1} parent=5 // pred_check_branch
        %143 = sbr.rel (%p140) target = $region12
      $region11: #{tpu_custom_call.1} parent=5 // pred_region
        %s144 = ssub.s32 %s15, 1
        // Predicated region
        $region13: #{tpu_custom_call.1} parent=11 // pred_check
          %p145 = pneg %p62
        $region14: #{tpu_custom_call.1} parent=11 // pred_check_branch
          %147 = sbr.rel (%p145) target = $region16
        $region15: #{tpu_custom_call.1} parent=11 // pred_region
          %149 = vsyncadd [#allocation3], 0
          %s150 = sshll.u32 %s1, 4
          %s151 = int_to_ptr.hbm [resolvable:$true] %s150
          %s152 = sshll.u32 [#allocation2], 4
          %s153 = int_to_ptr.vmem [resolvable:$true] %s152
          %158 = dma.hbm_to_vmem [thread:$0]  %s151, 512, %s153, [#allocation3], 128, 128, 8
        $region16: #{tpu_custom_call.1} parent=11 // pred_fallthru
          _
        // Predicated region
        $region17: #{tpu_custom_call.1} parent=11 // pred_check
          %p159 = pneg %p83
        $region18: #{tpu_custom_call.1} parent=11 // pred_check_branch
          %161 = sbr.rel (%p159) target = $region20
        $region19: #{tpu_custom_call.1} parent=11 // pred_region
          _
        $region20: #{tpu_custom_call.1} parent=11 // pred_fallthru
          _
        // Predicated region
        $region21: #{tpu_custom_call.1} parent=11 // pred_check
          %p162 = pneg %p104
        $region22: #{tpu_custom_call.1} parent=11 // pred_check_branch
          %164 = sbr.rel (%p162) target = $region24
        $region23: #{tpu_custom_call.1} parent=11 // pred_region
          %166 = vsyncadd [#allocation6], 0
          %s167 = sshll.u32 %s3, 4
          %s168 = int_to_ptr.hbm [resolvable:$true] %s167
          %s169 = sshll.u32 [#allocation5], 4
          %s170 = int_to_ptr.vmem [resolvable:$true] %s169
          %175 = dma.hbm_to_vmem [thread:$0]  %s168, 256, %s170, [#allocation6], 128, 128, 8
        $region24: #{tpu_custom_call.1} parent=11 // pred_fallthru
          _
      $region12: #{tpu_custom_call.1} parent=5 // pred_fallthru
        _
      %p176 = scmp.lt.s32.totalorder %s15, 2
      // Predicated region
      $region25: #{tpu_custom_call.1} parent=5 // pred_check
        %p177 = pneg %p176
      $region26: #{tpu_custom_call.1} parent=5 // pred_check_branch
        %179 = sbr.rel (%p177) target = $region28
      $region27: #{tpu_custom_call.1} parent=5 // pred_region
        // Predicated region
        $region29: #{tpu_custom_call.1} parent=27 // pred_check
          %p180 = pneg %p35
        $region30: #{tpu_custom_call.1} parent=27 // pred_check_branch
          %182 = sbr.rel (%p180) target = $region32
        $region31: #{tpu_custom_call.1} parent=27 // pred_region
          %p183 = scmp.lt.s32.totalorder %s15, 1
          %s184 = scalar_select %p183, %s15, 1
          %s185 = smul.addr %s184, 2
          %s186 = smul.addr %s185, 4
          %s187 = scalar_lea.vmem %s0, %s186
        $region32: #{tpu_custom_call.1} parent=27 // pred_fallthru
          _
      $region28: #{tpu_custom_call.1} parent=5 // pred_fallthru
        _
      %p188 = scmp.le.s32.totalorder 1, %s15
      %p189 = scmp.lt.s32.totalorder %s15, 3
      %p190 = pnand %p188, %p189
      %p191 = pneg %p190
      // Predicated region
      $region33: #{tpu_custom_call.1} parent=5 // pred_check
        _
      $region34: #{tpu_custom_call.1} parent=5 // pred_check_branch
        %193 = sbr.rel (%p190) target = $region36
      $region35: #{tpu_custom_call.1} parent=5 // pred_region
        %s194 = ssub.s32 %s15, 1
        // Predicated region
        $region37: #{tpu_custom_call.1} parent=35 // pred_check
          %p195 = pneg %p62
        $region38: #{tpu_custom_call.1} parent=35 // pred_check_branch
          %197 = sbr.rel (%p195) target = $region40
        $region39: #{tpu_custom_call.1} parent=35 // pred_region
          %199 = dma.done [#allocation3], 512
        $region40: #{tpu_custom_call.1} parent=35 // pred_fallthru
          _
        // Predicated region
        $region41: #{tpu_custom_call.1} parent=35 // pred_check
          %p200 = pneg %p104
        $region42: #{tpu_custom_call.1} parent=35 // pred_check_branch
          %202 = sbr.rel (%p200) target = $region44
        $region43: #{tpu_custom_call.1} parent=35 // pred_region
          %204 = dma.done [#allocation6], 256
        $region44: #{tpu_custom_call.1} parent=35 // pred_fallthru
          _
        %p205 = scmp.lt.s32.totalorder %s20, 1
        %s206 = scalar_select %p205, %s20, 1
        %s207 = smul.addr %s206, 2
        %s208 = smul.addr %s207, 4
        %s209 = scalar_lea.vmem %s0, %s208
        %p210 = pneg %p41
        %p211 = pneg %p38
        %p212 = pneg %p62
        %p213 = pneg %p59
        %p214 = pneg %p83
        %p215 = pneg %p80
        %p216 = pneg %p104
        %p217 = pneg %p101
        %p218 = pneg %p130
        %p219 = pneg %p127
        %s220 = sand.u32 %s117, 1
        %s221 = scalar_lea.sflag [#allocation4], %s220
        %s222 = sand.u32 %s117, 1
        %s223 = smul.addr %s222, 32
        %s224 = scalar_lea.vmem [#allocation7], %s223
        %p225 = scmp.lt.s32.totalorder %s20, 1
        %s226 = scalar_select %p225, %s20, 1
        %s227 = smul.addr %s226, 2
        %s228 = smul.addr %s227, 4
        %s229 = scalar_lea.vmem %s0, %s228
        %v230 = vld [vmem:[%s229] sm:$0xff]
        %232 = vst [vmem:[#allocation1] ss:$2 sm:$0xff] %v230
        %v233 = vld.sshfl [vmem:[#allocation1] sm:$0xff pattern:$0x75316420]
        %v234 = vld.sshfl [vmem:[#allocation1 + $0x8] sm:$0xff pattern:$0x75316420]
        %vm237 = vcmask 1043456
        %v238 = vsel %vm237, %v233, 0.0
        %v239 = vsel %vm237, %v234, 0.0
        %v240 = vlaneseq
        %v241 = vand.u32 %v240, 127
        %v242 = vadd.s32 %v241, 128
        %v243 = vshrl.u32 %v241, 4
        %v244 = vshrl.u32 %v242, 4
        %v245 = vand.u32 %v241, 15
        %v246 = vand.u32 %v242, 15
        %247 = vrot.lane.b32.xlu0 %v238, 17
        %v248 = vpop.permute.xlu0 %247
        %249 = vrot.lane.b32.xlu0 %v239, 17
        %v250 = vpop.permute.xlu0 %249
        %vm251 = vcmp.lt.s32.totalorder %v241, 17
        %v252 = vsel %vm251, %v248, %v250
        %v253 = vsel %vm251, %v250, %v248
        %v254 = vadd.s32 %v243, 4294967295
        %v255 = vadd.s32 %v244, 4294967295
        %vm256 = vcmp.ge.s32.totalorder %v254, 0
        %vm257 = vcmp.ge.s32.totalorder %v255, 0
        %vm258 = vcmp.lt.s32.totalorder %v254, 16
        %vm259 = vcmp.lt.s32.totalorder %v255, 16
        %vm260 = vmand %vm256, %vm258
        %vm261 = vmand %vm257, %vm259
        %v262 = vadd.s32 %v245, 4294967295
        %v263 = vadd.s32 %v246, 4294967295
        %vm264 = vcmp.ge.s32.totalorder %v262, 0
        %vm265 = vcmp.ge.s32.totalorder %v263, 0
        %vm266 = vmand %vm260, %vm264
        %vm267 = vmand %vm261, %vm265
        %vm268 = vcmp.lt.s32.totalorder %v262, 16
        %vm269 = vcmp.lt.s32.totalorder %v263, 16
        %vm270 = vmand %vm266, %vm268
        %vm271 = vmand %vm267, %vm269
        %v272 = vsel %vm270, 1, 0
        %v273 = vsel %vm271, 1, 0
        %vm274 = vcmp.eq.s32.totalorder %v272, 1
        %vm275 = vcmp.eq.s32.totalorder %v273, 1
        %v276 = vsel %vm274, %v253, 0.0
        %v277 = vsel %vm275, %v252, 0.0
        %278 = vrot.lane.b32.xlu0 %v238, 16
        %v279 = vpop.permute.xlu0 %278
        %280 = vrot.lane.b32.xlu0 %v239, 16
        %v281 = vpop.permute.xlu0 %280
        %vm282 = vcmp.lt.s32.totalorder %v241, 16
        %v283 = vsel %vm282, %v279, %v281
        %v284 = vsel %vm282, %v281, %v279
        %vm285 = vcmp.ge.s32.totalorder %v245, 0
        %vm286 = vcmp.ge.s32.totalorder %v246, 0
        %vm287 = vmand %vm260, %vm285
        %vm288 = vmand %vm261, %vm286
        %vm289 = vcmp.lt.s32.totalorder %v245, 16
        %vm290 = vcmp.lt.s32.totalorder %v246, 16
        %vm291 = vmand %vm287, %vm289
        %vm292 = vmand %vm288, %vm290
        %v293 = vsel %vm291, 1, 0
        %v294 = vsel %vm292, 1, 0
        %vm295 = vcmp.eq.s32.totalorder %v293, 1
        %vm296 = vcmp.eq.s32.totalorder %v294, 1
        %v297 = vsel %vm295, %v284, 0.0
        %v298 = vsel %vm296, %v283, 0.0
        %299 = vrot.lane.b32.xlu0 %v238, 15
        %v300 = vpop.permute.xlu0 %299
        %301 = vrot.lane.b32.xlu0 %v239, 15
        %v302 = vpop.permute.xlu0 %301
        %vm303 = vcmp.lt.s32.totalorder %v241, 15
        %v304 = vsel %vm303, %v300, %v302
        %v305 = vsel %vm303, %v302, %v300
        %v306 = vadd.s32 %v245, 1
        %v307 = vadd.s32 %v246, 1
        %vm308 = vcmp.ge.s32.totalorder %v306, 0
        %vm309 = vcmp.ge.s32.totalorder %v307, 0
        %vm310 = vmand %vm260, %vm308
        %vm311 = vmand %vm261, %vm309
        %vm312 = vcmp.lt.s32.totalorder %v306, 16
        %vm313 = vcmp.lt.s32.totalorder %v307, 16
        %vm314 = vmand %vm310, %vm312
        %vm315 = vmand %vm311, %vm313
        %v316 = vsel %vm314, 1, 0
        %v317 = vsel %vm315, 1, 0
        %vm318 = vcmp.eq.s32.totalorder %v316, 1
        %vm319 = vcmp.eq.s32.totalorder %v317, 1
        %v320 = vsel %vm318, %v305, 0.0
        %v321 = vsel %vm319, %v304, 0.0
        %322 = vrot.lane.b32.xlu0 %v238, 1
        %v323 = vpop.permute.xlu0 %322
        %324 = vrot.lane.b32.xlu0 %v239, 1
        %v325 = vpop.permute.xlu0 %324
        %vm326 = vcmp.lt.s32.totalorder %v241, 1
        %v327 = vsel %vm326, %v323, %v325
        %v328 = vsel %vm326, %v325, %v323
        %vm329 = vcmp.ge.s32.totalorder %v243, 0
        %vm330 = vcmp.ge.s32.totalorder %v244, 0
        %vm331 = vcmp.lt.s32.totalorder %v243, 16
        %vm332 = vcmp.lt.s32.totalorder %v244, 16
        %vm333 = vmand %vm329, %vm331
        %vm334 = vmand %vm330, %vm332
        %vm335 = vmand %vm333, %vm264
        %vm336 = vmand %vm334, %vm265
        %vm337 = vmand %vm335, %vm268
        %vm338 = vmand %vm336, %vm269
        %v339 = vsel %vm337, 1, 0
        %v340 = vsel %vm338, 1, 0
        %vm341 = vcmp.eq.s32.totalorder %v339, 1
        %vm342 = vcmp.eq.s32.totalorder %v340, 1
        %v343 = vsel %vm341, %v328, 0.0
        %v344 = vsel %vm342, %v327, 0.0
        %345 = vrot.lane.b32.xlu0 %v238, 127
        %v346 = vpop.permute.xlu0 %345
        %347 = vrot.lane.b32.xlu0 %v239, 127
        %v348 = vpop.permute.xlu0 %347
        %vm349 = vcmp.lt.s32.totalorder %v241, 127
        %v350 = vsel %vm349, %v346, %v348
        %v351 = vsel %vm349, %v348, %v346
        %vm352 = vmand %vm333, %vm308
        %vm353 = vmand %vm334, %vm309
        %vm354 = vmand %vm352, %vm312
        %vm355 = vmand %vm353, %vm313
        %v356 = vsel %vm354, 1, 0
        %v357 = vsel %vm355, 1, 0
        %vm358 = vcmp.eq.s32.totalorder %v356, 1
        %vm359 = vcmp.eq.s32.totalorder %v357, 1
        %v360 = vsel %vm358, %v350, 0.0
        %v361 = vsel %vm359, %v351, 0.0
        %362 = vrot.lane.b32.xlu0 %v238, 113
        %v363 = vpop.permute.xlu0 %362
        %364 = vrot.lane.b32.xlu0 %v239, 113
        %v365 = vpop.permute.xlu0 %364
        %vm366 = vcmp.lt.s32.totalorder %v241, 113
        %v367 = vsel %vm366, %v363, %v365
        %v368 = vsel %vm366, %v365, %v363
        %v369 = vadd.s32 %v243, 1
        %v370 = vadd.s32 %v244, 1
        %vm371 = vcmp.ge.s32.totalorder %v369, 0
        %vm372 = vcmp.ge.s32.totalorder %v370, 0
        %vm373 = vcmp.lt.s32.totalorder %v369, 16
        %vm374 = vcmp.lt.s32.totalorder %v370, 16
        %vm375 = vmand %vm371, %vm373
        %vm376 = vmand %vm372, %vm374
        %vm377 = vmand %vm375, %vm264
        %vm378 = vmand %vm376, %vm265
        %vm379 = vmand %vm377, %vm268
        %vm380 = vmand %vm378, %vm269
        %v381 = vsel %vm379, 1, 0
        %v382 = vsel %vm380, 1, 0
        %vm383 = vcmp.eq.s32.totalorder %v381, 1
        %vm384 = vcmp.eq.s32.totalorder %v382, 1
        %v385 = vsel %vm383, %v367, 0.0
        %v386 = vsel %vm384, %v368, 0.0
        %387 = vrot.lane.b32.xlu0 %v238, 112
        %v388 = vpop.permute.xlu0 %387
        %389 = vrot.lane.b32.xlu0 %v239, 112
        %v390 = vpop.permute.xlu0 %389
        %vm391 = vcmp.lt.s32.totalorder %v241, 112
        %v392 = vsel %vm391, %v388, %v390
        %v393 = vsel %vm391, %v390, %v388
        %vm394 = vmand %vm375, %vm285
        %vm395 = vmand %vm376, %vm286
        %vm396 = vmand %vm394, %vm289
        %vm397 = vmand %vm395, %vm290
        %v398 = vsel %vm396, 1, 0
        %v399 = vsel %vm397, 1, 0
        %vm400 = vcmp.eq.s32.totalorder %v398, 1
        %vm401 = vcmp.eq.s32.totalorder %v399, 1
        %v402 = vsel %vm400, %v392, 0.0
        %v403 = vsel %vm401, %v393, 0.0
        %404 = vrot.lane.b32.xlu0 %v238, 111
        %v405 = vpop.permute.xlu0 %404
        %406 = vrot.lane.b32.xlu0 %v239, 111
        %v407 = vpop.permute.xlu0 %406
        %vm408 = vcmp.lt.s32.totalorder %v241, 111
        %v409 = vsel %vm408, %v405, %v407
        %v410 = vsel %vm408, %v407, %v405
        %vm411 = vmand %vm375, %vm308
        %vm412 = vmand %vm376, %vm309
        %vm413 = vmand %vm411, %vm312
        %vm414 = vmand %vm412, %vm313
        %v415 = vsel %vm413, 1, 0
        %v416 = vsel %vm414, 1, 0
        %vm417 = vcmp.eq.s32.totalorder %v415, 1
        %vm418 = vcmp.eq.s32.totalorder %v416, 1
        %v419 = vsel %vm417, %v409, 0.0
        %v420 = vsel %vm418, %v410, 0.0
        %v421 = vld [vmem:[#allocation2] sm:$0xff]
        %v422 = vld [vmem:[#allocation2 + $0x8] sm:$0xff]
        %v423 = vld [vmem:[#allocation2 + $0x10] sm:$0xff]
        %v424 = vld [vmem:[#allocation2 + $0x18] sm:$0xff]
        %vm425 = vcmask 588800
        %v427 = vsel %vm425, %v421, 0
        %v430 = vsel %vm425, %v422, 0
        %v433 = vsel %vm425, %v423, 0
        %v436 = vsel %vm425, %v424, 0
        %438 = vmatpush.msra.mxu0 0.0
        %439 = vmatpush.msra.mxu0 0.0
        %440 = vmatpush.msra.mxu0 0.0
        %441 = vmatpush.msra.mxu0 0.0
        %442 = vmatpush.msra.mxu0 0.0
        %443 = vmatpush.msra.mxu0 0.0
        %444 = vmatpush.msra.mxu0 0.0
        %445 = vmatpush.msra.mxu0 %v419
        %446 = vmatpush.msra.mxu0 %v402
        %447 = vmatpush.msra.mxu0 %v385
        %448 = vmatpush.msra.mxu0 %v360
        %449 = vmatpush.msra.mxu0 %v238
        %450 = vmatpush.msra.mxu0 %v343
        %451 = vmatpush.msra.mxu0 %v320
        %452 = vmatpush.msra.mxu0 %v297
        %453 = vmatpush.msra.mxu0 %v276
        %454 = vmatmul.f32.gmra.mxu0 %v427
        %v455 = vpop.f32.mrf.mxu0
        %v456 = vadd.f32 0.0, %v455
        %457 = vmatmul.f32.gmra.mxu0 %v430
        %v458 = vpop.f32.mrf.mxu0
        %v459 = vadd.f32 0.0, %v458
        %460 = vmatmul.f32.gmra.mxu0 %v433
        %v461 = vpop.f32.mrf.mxu0
        %v462 = vadd.f32 0.0, %v461
        %463 = vmatmul.f32.gmra.mxu0 %v436
        %v464 = vpop.f32.mrf.mxu0
        %v465 = vadd.f32 0.0, %v464
        %466 = vdwg.mxu0
        %467 = vmatpush.msra.mxu0 0.0
        %468 = vmatpush.msra.mxu0 0.0
        %469 = vmatpush.msra.mxu0 0.0
        %470 = vmatpush.msra.mxu0 0.0
        %471 = vmatpush.msra.mxu0 0.0
        %472 = vmatpush.msra.mxu0 0.0
        %473 = vmatpush.msra.mxu0 0.0
        %474 = vmatpush.msra.mxu0 %v420
        %475 = vmatpush.msra.mxu0 %v403
        %476 = vmatpush.msra.mxu0 %v386
        %477 = vmatpush.msra.mxu0 %v361
        %478 = vmatpush.msra.mxu0 %v239
        %479 = vmatpush.msra.mxu0 %v344
        %480 = vmatpush.msra.mxu0 %v321
        %481 = vmatpush.msra.mxu0 %v298
        %482 = vmatpush.msra.mxu0 %v277
        %483 = vmatmul.f32.gmra.mxu0 %v427
        %v484 = vpop.f32.mrf.mxu0
        %v485 = vadd.f32 0.0, %v484
        %486 = vmatmul.f32.gmra.mxu0 %v430
        %v487 = vpop.f32.mrf.mxu0
        %v488 = vadd.f32 0.0, %v487
        %489 = vmatmul.f32.gmra.mxu0 %v433
        %v490 = vpop.f32.mrf.mxu0
        %v491 = vadd.f32 0.0, %v490
        %492 = vmatmul.f32.gmra.mxu0 %v436
        %v493 = vpop.f32.mrf.mxu0
        %v494 = vadd.f32 0.0, %v493
        %495 = vdwg.mxu0
        %v496 = vld [vmem:[%s2] sm:$0xff]
        %v497 = vld [vmem:[%s2 + $0x8] sm:$0xff]
        %v498 = vadd.f32 %v456, %v485
        %499 = vadd.xlane.f32.xlu0 %v498
        %v500 = vpop.xlane.xlu0 %499
        %v501 = vadd.f32 %v459, %v488
        %502 = vadd.xlane.f32.xlu0 %v501
        %v503 = vpop.xlane.xlu0 %502
        %v504 = vmul.f32 %v456, %v456
        %v505 = vmul.f32 %v485, %v485
        %v506 = vmul.f32 %v459, %v459
        %v507 = vmul.f32 %v488, %v488
        %v508 = vadd.f32 %v504, %v505
        %509 = vadd.xlane.f32.xlu0 %v508
        %v510 = vpop.xlane.xlu0 %509
        %v511 = vadd.f32 %v506, %v507
        %512 = vadd.xlane.f32.xlu0 %v511
        %v513 = vpop.xlane.xlu0 %512
        %v514 = vmul.f32 %v496, 256.0
        %v515 = vmul.f32 %v497, 256.0
        %v516 = vadd.f32 %v500, %v514
        %v517 = vadd.f32 %v503, %v515
        %v518 = vmul.f32 %v496, 2.0
        %v519 = vmul.f32 %v497, 2.0
        %v520 = vmul.f32 %v518, %v500
        %v521 = vmul.f32 %v519, %v503
        %v522 = vadd.f32 %v510, %v520
        %v523 = vadd.f32 %v513, %v521
        %v524 = vmul.f32 %v496, %v496
        %v525 = vmul.f32 %v497, %v497
        %v526 = vmul.f32 %v524, 256.0
        %v527 = vmul.f32 %v525, 256.0
        %v528 = vadd.f32 %v522, %v526
        %v529 = vadd.f32 %v523, %v527
        %v530 = vld [vmem:[#allocation5] sm:$0xff]
        %v531 = vld [vmem:[#allocation5 + $0x8] sm:$0xff]
        %vm532 = vcmask 130048
        %v534 = vsel %vm532, %v530, 0
        %v537 = vsel %vm532, %v531, 0
        %539 = vmatpush.msra.mxu0 0.0
        %540 = vmatpush.msra.mxu0 0.0
        %541 = vmatpush.msra.mxu0 0.0
        %542 = vmatpush.msra.mxu0 0.0
        %543 = vmatpush.msra.mxu0 0.0
        %544 = vmatpush.msra.mxu0 0.0
        %545 = vmatpush.msra.mxu0 0.0
        %546 = vmatpush.msra.mxu0 0.0
        %547 = vmatpush.msra.mxu0 0.0
        %548 = vmatpush.msra.mxu0 0.0
        %549 = vmatpush.msra.mxu0 0.0
        %550 = vmatpush.msra.mxu0 0.0
        %551 = vmatpush.msra.mxu0 0.0
        %552 = vmatpush.msra.mxu0 0.0
        %553 = vmatpush.msra.mxu0 %v517
        %554 = vmatpush.msra.mxu0 %v516
        %555 = vmatmul.f32.gmra.mxu0 %v534
        %v556 = vpop.f32.mrf.mxu0
        %v557 = vadd.f32 0.0, %v556
        %558 = vmatmul.f32.gmra.mxu0 %v537
        %v559 = vpop.f32.mrf.mxu0
        %v560 = vadd.f32 0.0, %v559
        %561 = vdwg.mxu0
        %562 = vmatpush.msra.mxu0 0.0
        %563 = vmatpush.msra.mxu0 0.0
        %564 = vmatpush.msra.mxu0 0.0
        %565 = vmatpush.msra.mxu0 0.0
        %566 = vmatpush.msra.mxu0 0.0
        %567 = vmatpush.msra.mxu0 0.0
        %568 = vmatpush.msra.mxu0 0.0
        %569 = vmatpush.msra.mxu0 0.0
        %570 = vmatpush.msra.mxu0 0.0
        %571 = vmatpush.msra.mxu0 0.0
        %572 = vmatpush.msra.mxu0 0.0
        %573 = vmatpush.msra.mxu0 0.0
        %574 = vmatpush.msra.mxu0 0.0
        %575 = vmatpush.msra.mxu0 0.0
        %576 = vmatpush.msra.mxu0 %v529
        %577 = vmatpush.msra.mxu0 %v528
        %578 = vmatmul.f32.gmra.mxu0 %v534
        %v579 = vpop.f32.mrf.mxu0
        %v580 = vadd.f32 0.0, %v579
        %581 = vmatmul.f32.gmra.mxu0 %v537
        %v582 = vpop.f32.mrf.mxu0
        %v583 = vadd.f32 0.0, %v582
        %584 = vdwg.mxu0
        %v585 = vmul.f32 %v557, 0.001953125
        %v586 = vmul.f32 %v560, 0.001953125
        %v587 = vmul.f32 %v580, 0.001953125
        %v588 = vmul.f32 %v583, 0.001953125
        %v589 = vmul.f32 %v585, %v585
        %v590 = vmul.f32 %v586, %v586
        %v591 = vsub.f32 %v587, %v589
        %v592 = vsub.f32 %v588, %v590
        %v593 = vmax.f32 %v591, 0.0
        %v594 = vmax.f32 %v592, 0.0
        %v595 = vadd.f32 %v593, 1e-05
        %v596 = vadd.f32 %v594, 1e-05
        %v597 = vrsqrt.pop %v595
        %v598 = vmul.f32 %v597, %v595
        %v599 = vmul.f32 %v598, %v597
        %v600 = vmul.f32 0.5, %v599
        %v601 = vsub.f32 1.5, %v600
        %v602 = vmul.f32 %v597, %v601
        %vm603 = vweird.f32 %v595
        %vm604 = vweird.f32 %v597
        %vm605 = vmor %vm603, %vm604
        %v606 = vsel %vm605, %v597, %v602
        %v607 = vrsqrt.pop %v596
        %v608 = vmul.f32 %v607, %v596
        %v609 = vmul.f32 %v608, %v607
        %v610 = vmul.f32 0.5, %v609
        %v611 = vsub.f32 1.5, %v610
        %v612 = vmul.f32 %v607, %v611
        %vm613 = vweird.f32 %v596
        %vm614 = vweird.f32 %v607
        %vm615 = vmor %vm613, %vm614
        %v616 = vsel %vm615, %v607, %v612
        %619 = vrot.lane.b32.xlu0 %v606, 2
        %v620 = vpop.permute.xlu0 %619
        %621 = vrot.lane.b32.xlu0 %v616, 2
        %v622 = vpop.permute.xlu0 %621
        %v625 = vmul.f32 %v496, %v620
        %v626 = vmul.f32 %v497, %v622
        %v627 = vsub.f32 %v496, %v585
        %v628 = vsub.f32 %v497, %v586
        %631 = vrot.lane.b32.xlu0 %v627, 2
        %v632 = vpop.permute.xlu0 %631
        %633 = vrot.lane.b32.xlu0 %v628, 2
        %v634 = vpop.permute.xlu0 %633
        %v637 = vmul.f32 %v625, %v632
        %v638 = vmul.f32 %v626, %v634
        %641 = vrot.lane.b32.xlu0 %v637, 1
        %v642 = vpop.permute.xlu0 %641
        %643 = vrot.lane.b32.xlu0 %v638, 1
        %v644 = vpop.permute.xlu0 %643
        %v647 = vadd.f32 %v496, %v642
        %v648 = vadd.f32 %v497, %v644
        %651 = vrot.lane.b32.xlu0 %v496, 2
        %v652 = vpop.permute.xlu0 %651
        %653 = vrot.lane.b32.xlu0 %v497, 2
        %v654 = vpop.permute.xlu0 %653
        %v657 = vadd.f32 %v647, %v652
        %v658 = vadd.f32 %v648, %v654
        %660 = vset.pattern.permute.xlu0 2
        %661 = vperm.xlu0 %660, %v625
        %v662 = vpop.permute.xlu0 %661
        %665 = vset.pattern.permute.xlu0 2
        %666 = vperm.xlu0 %665, %v626
        %v667 = vpop.permute.xlu0 %666
        %v669 = vmul.f32 %v456, %v662
        %v670 = vmul.f32 %v485, %v662
        %v671 = vmul.f32 %v459, %v667
        %v672 = vmul.f32 %v488, %v667
        %v673 = vadd.f32 %v669, %v462
        %v674 = vadd.f32 %v670, %v491
        %v675 = vadd.f32 %v671, %v465
        %v676 = vadd.f32 %v672, %v494
        %678 = vset.pattern.permute.xlu0 3
        %679 = vperm.xlu0 %678, %v657
        %v680 = vpop.permute.xlu0 %679
        %683 = vset.pattern.permute.xlu0 3
        %684 = vperm.xlu0 %683, %v658
        %v685 = vpop.permute.xlu0 %684
        %v687 = vadd.f32 %v673, %v680
        %v688 = vadd.f32 %v674, %v680
        %v689 = vadd.f32 %v675, %v685
        %v690 = vadd.f32 %v676, %v685
        %vm691 = vcmp.gt.f32.partialorder %v687, 0.0
        %vm692 = vcmp.gt.f32.partialorder %v688, 0.0
        %vm693 = vcmp.gt.f32.partialorder %v689, 0.0
        %vm694 = vcmp.gt.f32.partialorder %v690, 0.0
        %v695 = vmin.f32 %v687, 0.0
        %v696 = vmin.f32 %v688, 0.0
        %v697 = vmin.f32 %v689, 0.0
        %v698 = vmin.f32 %v690, 0.0
        %v699 = vmul.f32 %v695, 1.442695
        %v700 = vpow.pop %v699
        %v701 = vmul.f32 %v696, 1.442695
        %v702 = vpow.pop %v701
        %v703 = vmul.f32 %v697, 1.442695
        %v704 = vpow.pop %v703
        %v705 = vmul.f32 %v698, 1.442695
        %v706 = vpow.pop %v705
        %v707 = vsub.f32 %v700, 1.0
        %v708 = vsub.f32 %v702, 1.0
        %v709 = vsub.f32 %v704, 1.0
        %v710 = vsub.f32 %v706, 1.0
        %v711 = vsel %vm691, %v687, %v707
        %v712 = vsel %vm692, %v688, %v708
        %v713 = vsel %vm693, %v689, %v709
        %v714 = vsel %vm694, %v690, %v710
        %715 = vst [vmem:[%s224] sm:$0xff] %v711
        %716 = vst [vmem:[%s224 + $0x8] sm:$0xff] %v712
        %717 = vst [vmem:[%s224 + $0x10] sm:$0xff] %v713
        %718 = vst [vmem:[%s224 + $0x18] sm:$0xff] %v714
        %s719 = sand.u32 %s117, 1
        %s720 = scalar_lea.sflag [#allocation4], %s719
        %s721 = sand.u32 %s117, 1
        %s722 = smul.addr %s721, 32
        %s723 = scalar_lea.vmem [#allocation7], %s722
        // Predicated region
        $region45: #{tpu_custom_call.1} parent=35 // pred_check
          %p724 = pneg %p127
        $region46: #{tpu_custom_call.1} parent=35 // pred_check_branch
          %726 = sbr.rel (%p724) target = $region48
        $region47: #{tpu_custom_call.1} parent=35 // pred_region
          %728 = vsyncadd %s720, 0
          %s729 = smul.addr %s20, 4
          %s730 = smul.addr %s729, 8
          %s731 = scalar_lea.hbm %s4, %s730
          %s732 = sshll.u32 %s723, 4
          %s733 = int_to_ptr.vmem [resolvable:$true] %s732
          %s734 = sshll.u32 %s731, 4
          %s735 = int_to_ptr.hbm [resolvable:$true] %s734
          %740 = dma.vmem_to_hbm [thread:$0]  %s733, 512, %s735, %s720, 256, 256, 16
        $region48: #{tpu_custom_call.1} parent=35 // pred_fallthru
          _
      $region36: #{tpu_custom_call.1} parent=5 // pred_fallthru
        _
      %p741 = scmp.le.s32.totalorder 2, %s15
      // Predicated region
      $region49: #{tpu_custom_call.1} parent=5 // pred_check
        %p742 = pneg %p741
      $region50: #{tpu_custom_call.1} parent=5 // pred_check_branch
        %744 = sbr.rel (%p742) target = $region52
      $region51: #{tpu_custom_call.1} parent=5 // pred_region
        %s745 = ssub.s32 %s15, 2
        // Predicated region
        $region53: #{tpu_custom_call.1} parent=51 // pred_check
          %p746 = pneg %p133
        $region54: #{tpu_custom_call.1} parent=51 // pred_check_branch
          %748 = sbr.rel (%p746) target = $region56
        $region55: #{tpu_custom_call.1} parent=51 // pred_region
          %s749 = sand.u32 %s118, 1
          %s750 = scalar_lea.sflag [#allocation4], %s749
          %s751 = sand.u32 %s118, 1
          %s752 = smul.addr %s751, 32
          %s753 = scalar_lea.vmem [#allocation7], %s752
          %755 = dma.done %s750, 512
        $region56: #{tpu_custom_call.1} parent=51 // pred_fallthru
          _
      $region52: #{tpu_custom_call.1} parent=5 // pred_fallthru
        _
    $region6: #{tpu_custom_call.1} parent=1 // loop_footer
      %s19 = sadd.s32 1, %s15
    $region7: #{tpu_custom_call.1} parent=1 // loop_footer_branch
      %14 = sbr.rel target = $region3
    $region8: #{tpu_custom_call.1} parent=1 // loop_exit
      _
    %756 = vsyncpa [#allocation3], 1
    %s757 = scalar_lea.sflag [#allocation3], 1
    %758 = vsyncpa %s757, 1
    %759 = vsyncpa [#allocation6], 1
    %760 = vsyncpa [#allocation4], 1
    %s761 = scalar_lea.sflag [#allocation4], 1
    %762 = vsyncpa %s761, 1

</llo_original>
